<compile_context>
chip_gen: v6e
topology: v6e:2x2x1
jax: 0.10.0
libtpu: 0.0.40
codegen_flags: <defaults>
</compile_context>

<pallas_src>
import jax
import jax.numpy as jnp
from jax.experimental import pallas as pl
from jax.experimental.pallas import tpu as pltpu

OneHot_len = 16
IN_DIM = 3 * OneHot_len   # 48
OUT_DIM = 3
W_PAD = 128               # weight columns padded to one full vreg of lanes (MXU-friendly)
DEFAULT_BLOCK_B = 8192    # batch tile; multiple of 8; ~1.5 MiB of x per step


def _round_up(x, m):
    return ((x + m - 1) // m) * m


def pad_mlp_params(weights, bias):
    """One-time (init-time) param prep: zero-pad weight columns to W_PAD, bias -> f32."""
    in_dim, out_dim = weights.shape
    w_pad = jnp.zeros((in_dim, W_PAD), jnp.float32).at[:, :out_dim].set(
        weights.astype(jnp.float32))
    b = bias.astype(jnp.float32).reshape(1, out_dim)
    return w_pad, b


def mlp_kernel(x_ref, w_ref, b_ref, o_ref):
    # x: (tb, IN_DIM) f32, w: (IN_DIM, W_PAD) f32, b: (1, OUT_DIM) f32, o: (tb, OUT_DIM)
    acc = jnp.dot(x_ref[...], w_ref[...], preferred_element_type=jnp.float32)
    out_dim = o_ref.shape[1]
    o_ref[...] = (acc[:, :out_dim] + b_ref[...]).astype(o_ref.dtype)


def mlp_forward(xb, w_pad, bias, *, block_b=DEFAULT_BLOCK_B):
    """xb: (B, IN_DIM) f32, w_pad: (IN_DIM, W_PAD) f32, bias: (1, OUT_DIM) f32
    -> (B, OUT_DIM) f32.  No wrapper-side copies: narrow output, ragged last tile."""
    B, in_dim = xb.shape
    out_dim = bias.shape[1]

    # Batch tile: multiple of 8, capped at block_b; grid covers B with a ragged tail.
    tb = min(block_b, _round_up(B, 8))
    grid = (pl.cdiv(B, tb),)

    xb = xb.astype(jnp.float32)

    return pl.pallas_call(
        mlp_kernel,
        out_shape=jax.ShapeDtypeStruct((B, out_dim), jnp.float32),
        grid=grid,
        in_specs=[
            pl.BlockSpec((tb, in_dim), lambda i: (i, 0)),      # streamed batch tiles
            pl.BlockSpec((in_dim, W_PAD), lambda i: (0, 0)),   # resident padded weights
            pl.BlockSpec((1, out_dim), lambda i: (0, 0)),      # resident bias (full extent)
        ],
        out_specs=pl.BlockSpec((tb, out_dim), lambda i: (i, 0)),  # narrow writeback
        compiler_params=pltpu.CompilerParams(
            dimension_semantics=("parallel",),   # dual-TC sharding on v7x
        ),
    )(xb, w_pad, bias)


if __name__ == "__main__":
    key = jax.random.PRNGKey(0)
    kx, kw = jax.random.split(key)

    # Small shapes consistent with the module (feature dim = 3 * OneHot_len = 48).
    batch = 8
    xb = jax.random.normal(kx, (batch, IN_DIM), dtype=jnp.float32)
    weights = jax.random.normal(kw, (IN_DIM, OUT_DIM), dtype=jnp.float32)  # randn
    bias = jnp.zeros((1, OUT_DIM), dtype=jnp.float32)                      # zeros

    # One-time param prep (hoisted out of the forward hot path).
    w_pad, b_f32 = pad_mlp_params(weights, bias)

    ref = xb @ weights + bias
    out = jax.block_until_ready(mlp_forward(xb, w_pad, b_f32))
    assert out.shape == (batch, OUT_DIM)
    assert jnp.allclose(out, ref, atol=1e-5, rtol=1e-5)

    # Larger, non-multiple batch to exercise the ragged last tile (no jnp.pad copy).
    batch2 = 2053
    xb2 = jax.random.normal(jax.random.PRNGKey(1), (batch2, IN_DIM), dtype=jnp.float32)
    out2 = jax.block_until_ready(mlp_forward(xb2, w_pad, b_f32))
    ref2 = xb2 @ weights + bias
    assert out2.shape == (batch2, OUT_DIM)
    assert jnp.allclose(out2, ref2, atol=1e-4, rtol=1e-5)

    # Multi-tile batch (exercises the batch grid / parallel axis).
    batch3 = 3 * DEFAULT_BLOCK_B + 517
    xb3 = jax.random.normal(jax.random.PRNGKey(2), (batch3, IN_DIM), dtype=jnp.float32)
    out3 = jax.block_until_ready(mlp_forward(xb3, w_pad, b_f32))
    ref3 = xb3 @ weights + bias
    assert out3.shape == (batch3, OUT_DIM)
    assert jnp.allclose(out3, ref3, atol=1e-4, rtol=1e-5)

    print("KERNEL_OK")
</pallas_src>

<mosaic_0001>
module attributes {stable_mosaic.version = 11 : i64} {
  func.func @mlp_kernel(%arg0: i32, %arg1: memref<8x48xf32, #tpu.memory_space<vmem>>, %arg2: memref<48x128xf32, #tpu.memory_space<vmem>>, %arg3: memref<1x3xf32, #tpu.memory_space<vmem>>, %arg4: memref<8x3xf32, #tpu.memory_space<vmem>>) attributes {dimension_semantics = [#tpu.dimension_semantics<parallel>], iteration_bounds = array<i64: 1>, scalar_prefetch = 0 : i64, scratch_operands = 0 : i64, tpu.core_type = #tpu.core_type<tc>, window_params = [{transform_indices = @transform_0, window_bounds = array<i64: 8, 48>}, {pipeline_mode = #tpu.pipeline_mode<synchronous>, transform_indices = @transform_1, window_bounds = array<i64: 48, 128>}, {pipeline_mode = #tpu.pipeline_mode<synchronous>, transform_indices = @transform_2, window_bounds = array<i64: 1, 3>}, {transform_indices = @transform_3, window_bounds = array<i64: 8, 3>}]} {
    %c0 = arith.constant 0 : index
    %c0_0 = arith.constant 0 : index
    %0 = vector.load %arg1[%c0, %c0_0] : memref<8x48xf32, #tpu.memory_space<vmem>>, vector<8x48xf32>
    %c0_1 = arith.constant 0 : index
    %c0_2 = arith.constant 0 : index
    %1 = vector.load %arg2[%c0_1, %c0_2] : memref<48x128xf32, #tpu.memory_space<vmem>>, vector<48x128xf32>
    %cst = arith.constant dense<0.000000e+00> : vector<8x128xf32>
    %2 = tpu.matmul %0, %1, %cst {dimension_numbers = #tpu.dot_dimension_numbers<[1], [0], [0], [1], [0, 0, 1, 1], [], []>} : vector<8x48xf32>, vector<48x128xf32>, vector<8x128xf32> -> vector<8x128xf32>
    %3 = vector.extract_strided_slice %2 {offsets = [0, 0], sizes = [8, 3], strides = [1, 1]} : vector<8x128xf32> to vector<8x3xf32>
    %c0_3 = arith.constant 0 : index
    %c0_4 = arith.constant 0 : index
    %4 = vector.load %arg3[%c0_3, %c0_4] : memref<1x3xf32, #tpu.memory_space<vmem>>, vector<1x3xf32>
    %5 = vector.broadcast %4 : vector<1x3xf32> to vector<8x3xf32>
    %6 = arith.addf %3, %5 : vector<8x3xf32>
    %c0_5 = arith.constant 0 : index
    %c0_6 = arith.constant 0 : index
    %7 = vector.load %arg4[%c0_5, %c0_6] : memref<8x3xf32, #tpu.memory_space<vmem>>, vector<8x3xf32>
    tpu.vector_store %arg4[%c0_5, %c0_6], %6 {strides = array<i32>} : memref<8x3xf32, #tpu.memory_space<vmem>>, vector<8x3xf32>,
    return
  }
  func.func @transform_0(%arg0: i32) -> (i32, i32) {
    %c0_i32 = arith.constant 0 : i32
    %c0_i32_0 = arith.constant 0 : i32
    return %arg0, %c0_i32 : i32, i32
  }
  func.func @transform_1(%arg0: i32) -> (i32, i32) {
    %c0_i32 = arith.constant 0 : i32
    %c0_i32_0 = arith.constant 0 : i32
    %c0_i32_1 = arith.constant 0 : i32
    return %c0_i32, %c0_i32_0 : i32, i32
  }
  func.func @transform_2(%arg0: i32) -> (i32, i32) {
    %c0_i32 = arith.constant 0 : i32
    %c0_i32_0 = arith.constant 0 : i32
    %c0_i32_1 = arith.constant 0 : i32
    return %c0_i32, %c0_i32_0 : i32, i32
  }
  func.func @transform_3(%arg0: i32) -> (i32, i32) {
    %c0_i32 = arith.constant 0 : i32
    %c0_i32_0 = arith.constant 0 : i32
    return %arg0, %c0_i32 : i32, i32
  }
}

</mosaic_0001>

<llo_original>
// kernel: tpu_custom_call.1
$region0: #{tpu_custom_call.1}
  #allocation0 [shape = 'u32[]', space=smem, size = 0x4, offset = 0x4, fixed_abs, tag = 'smem constant byte address 0x4 - core index']
  #allocation1 [shape = 'u32[144,128]{1,0:T(1,128)}', space=vmem, size = 0x12000, scoped, tag = 'internal scratch']
  %s0 = inlined_call_operand.hbm [shape: f32[8,48], index: 0, kind: input, shape index: {}]
  %s1 = inlined_call_operand.hbm [shape: f32[48,128], index: 1, kind: input, shape index: {}]
  %s2 = inlined_call_operand.vmem [shape: f32[1,3], index: 2, kind: input, shape index: {}]
  %s3 = inlined_call_operand.vmem [shape: f32[8,3], index: 3, kind: output, shape index: {}]
  %s4 = sld [smem:[#allocation0]]
  $region30: #{tpu_custom_call.1} parent=0
    _
  %s6 = ssub.s32 1, %s4
  %s7 = scalar_select 0, %s6, %s4
  $region1: #{tpu_custom_call.1} parent=0
    #allocation2 [shape = 'u8[4096]{0}', space=vmem, size = 0x1000, scoped, tag = 'input window, operand 0, single buffered']
    #allocation3 [shape = 's32[1]{0}', space=sflag, size = 0x4, scoped, tag = 'scoped memory for tpu_custom_call.1']
    #allocation4 [shape = 'u8[24576]{0}', space=vmem, size = 0x6000, scoped, tag = 'input window, operand 1, single buffered']
    #allocation5 [shape = 's32[1]{0}', space=sflag, size = 0x4, scoped, tag = 'scoped memory for tpu_custom_call.1']
    %8 = vsyncpa [#allocation3], 0
    %9 = vsyncpa [#allocation5], 0
    // Predicated region
    $region2: #{tpu_custom_call.1} parent=1 // pred_check
      _
    $region3: #{tpu_custom_call.1} parent=1 // pred_check_branch
      %11 = sbr.rel (0) target = $region5
    $region4: #{tpu_custom_call.1} parent=1 // pred_region
      %s13 = ssub.s32 128, 128
      %14 = vsyncadd [#allocation3], %s13
      %s16 = sshll.u32 [#allocation2], 4
      %s17 = int_to_ptr.vmem [resolvable:$true] %s16
      %19 = dma.hbm_to_vmem [thread:$0]  %s0, 128, %s17, [#allocation3]
    $region5: #{tpu_custom_call.1} parent=1 // pred_fallthru
      _
    // Predicated region
    $region6: #{tpu_custom_call.1} parent=1 // pred_check
      _
    $region7: #{tpu_custom_call.1} parent=1 // pred_check_branch
      %21 = sbr.rel (0) target = $region9
    $region8: #{tpu_custom_call.1} parent=1 // pred_region
      %s23 = ssub.s32 768, 768
      %24 = vsyncadd [#allocation5], %s23
      %s25 = sshll.u32 [#allocation4], 4
      %s26 = int_to_ptr.vmem [resolvable:$true] %s25
      %31 = dma.hbm_to_vmem [thread:$0]  %s1, 768, %s26, [#allocation5], 128, 128, 8
    $region9: #{tpu_custom_call.1} parent=1 // pred_fallthru
      _
    // Predicated region
    $region10: #{tpu_custom_call.1} parent=1 // pred_check
      _
    $region11: #{tpu_custom_call.1} parent=1 // pred_check_branch
      %33 = sbr.rel (0) target = $region13
    $region12: #{tpu_custom_call.1} parent=1 // pred_region
      _
    $region13: #{tpu_custom_call.1} parent=1 // pred_fallthru
      _
    // Predicated region
    $region14: #{tpu_custom_call.1} parent=1 // pred_check
      _
    $region15: #{tpu_custom_call.1} parent=1 // pred_check_branch
      %35 = sbr.rel (0) target = $region17
    $region16: #{tpu_custom_call.1} parent=1 // pred_region
      %36 = dma.done [#allocation3], 128
    $region17: #{tpu_custom_call.1} parent=1 // pred_fallthru
      _
    // Predicated region
    $region18: #{tpu_custom_call.1} parent=1 // pred_check
      _
    $region19: #{tpu_custom_call.1} parent=1 // pred_check_branch
      %38 = sbr.rel (0) target = $region21
    $region20: #{tpu_custom_call.1} parent=1 // pred_region
      %39 = dma.done [#allocation5], 768
    $region21: #{tpu_custom_call.1} parent=1 // pred_fallthru
      _
    %v40 = vld [vmem:[#allocation2] sm:$0xff]
    %v41 = vld [vmem:[#allocation4] sm:$0xff]
    %v42 = vld [vmem:[#allocation4 + $0x8] sm:$0xff]
    %v43 = vld [vmem:[#allocation4 + $0x10] sm:$0xff]
    %v44 = vld [vmem:[#allocation4 + $0x18] sm:$0xff]
    %v45 = vld [vmem:[#allocation4 + $0x20] sm:$0xff]
    %v46 = vld [vmem:[#allocation4 + $0x28] sm:$0xff]
    %vm47 = vcmask 392192
    %v49 = vsel %vm47, %v40, 0
    %51 = vmatprep.subr.mxu0 0.0
    %52 = vmatpush1.msra.mxu0 0.0
    %53 = vmatprep.subr.mxu0 0.0
    %54 = vmatpush1.msra.mxu0 0.0
    %55 = vmatprep.subr.mxu0 0.0
    %56 = vmatpush1.msra.mxu0 0.0
    %57 = vmatprep.subr.mxu0 0.0
    %58 = vmatpush1.msra.mxu0 0.0
    %59 = vmatprep.subr.mxu0 0.0
    %60 = vmatpush1.msra.mxu0 0.0
    %61 = vmatprep.subr.mxu0 0.0
    %62 = vmatpush1.msra.mxu0 0.0
    %63 = vmatprep.subr.mxu0 0.0
    %64 = vmatpush1.msra.mxu0 0.0
    %65 = vmatprep.subr.mxu0 0.0
    %66 = vmatpush1.msra.mxu0 0.0
    %67 = vmatprep.subr.mxu0 0.0
    %68 = vmatpush1.msra.mxu0 0.0
    %69 = vmatprep.subr.mxu0 0.0
    %70 = vmatpush1.msra.mxu0 0.0
    %71 = vmatprep.subr.mxu0 0.0
    %72 = vmatpush1.msra.mxu0 %v46
    %73 = vmatprep.subr.mxu0 0.0
    %74 = vmatpush1.msra.mxu0 %v45
    %75 = vmatprep.subr.mxu0 0.0
    %76 = vmatpush1.msra.mxu0 %v44
    %77 = vmatprep.subr.mxu0 0.0
    %78 = vmatpush1.msra.mxu0 %v43
    %79 = vmatprep.subr.mxu0 0.0
    %80 = vmatpush1.msra.mxu0 %v42
    %81 = vmatprep.subr.mxu0 0.0
    %82 = vmatpush1.msra.mxu0 %v41
    %83 = vmatprep.subr.mxu0 0.0
    %84 = vmatpush2.msra.mxu0 0.0
    %85 = vmatprep.subr.mxu0 0.0
    %86 = vmatpush2.msra.mxu0 0.0
    %87 = vmatprep.subr.mxu0 0.0
    %88 = vmatpush2.msra.mxu0 0.0
    %89 = vmatprep.subr.mxu0 0.0
    %90 = vmatpush2.msra.mxu0 0.0
    %91 = vmatprep.subr.mxu0 0.0
    %92 = vmatpush2.msra.mxu0 0.0
    %93 = vmatprep.subr.mxu0 0.0
    %94 = vmatpush2.msra.mxu0 0.0
    %95 = vmatprep.subr.mxu0 0.0
    %96 = vmatpush2.msra.mxu0 0.0
    %97 = vmatprep.subr.mxu0 0.0
    %98 = vmatpush2.msra.mxu0 0.0
    %99 = vmatprep.subr.mxu0 0.0
    %100 = vmatpush2.msra.mxu0 0.0
    %101 = vmatprep.subr.mxu0 0.0
    %102 = vmatpush2.msra.mxu0 0.0
    %103 = vmatprep.subr.mxu0 0.0
    %104 = vmatpush2.msra.mxu0 0.0
    %105 = vmatprep.subr.mxu0 0.0
    %106 = vmatpush2.msra.mxu0 0.0
    %107 = vmatprep.subr.mxu0 0.0
    %108 = vmatpush2.msra.mxu0 0.0
    %109 = vmatprep.subr.mxu0 0.0
    %110 = vmatpush2.msra.mxu0 0.0
    %111 = vmatprep.subr.mxu0 0.0
    %112 = vmatpush2.msra.mxu0 0.0
    %113 = vmatprep.subr.mxu0 0.0
    %114 = vmatpush2.msra.mxu0 0.0
    %115 = vmatprep.mubr.f32.mxu0 0.0
    %116 = vmatmul.mubr.f32.gmra.mxu0 %v49
    %v117 = vpop.f32.mrf.mxu0
    %v118 = vadd.f32 0.0, %v117
    %v119 = vpop.f32.mrf.mxu0
    %120 = vdwg.mxu0
    %v121 = vld [vmem:[%s2] sm:$0x1]
    %v123 = vlaneseq
    %v124 = vshrl.u32 %v123, 7
    %v125 = vsub.s32 0, %v124
    %v126 = vrot.slane %v121, %v125
    %v128 = vadd.f32 %v118, %v126
    %vm129 = vcmask 23552
    %130 = vst.msk [vmem:[%s3] sm:$0xff] %vm129, %v128
    // Predicated region
    $region22: #{tpu_custom_call.1} parent=1 // pred_check
      _
    $region23: #{tpu_custom_call.1} parent=1 // pred_check_branch
      %132 = sbr.rel (0) target = $region25
    $region24: #{tpu_custom_call.1} parent=1 // pred_region
      _
    $region25: #{tpu_custom_call.1} parent=1 // pred_fallthru
      _
    // Predicated region
    $region26: #{tpu_custom_call.1} parent=1 // pred_check
      _
    $region27: #{tpu_custom_call.1} parent=1 // pred_check_branch
      %134 = sbr.rel (0) target = $region29
    $region28: #{tpu_custom_call.1} parent=1 // pred_region
      _
    $region29: #{tpu_custom_call.1} parent=1 // pred_fallthru
      _
    %135 = vsyncpa [#allocation3], 1
    %136 = vsyncpa [#allocation5], 1

</llo_original>
